<compile_context>
chip_gen: v7x
topology: tpu7x:2x2x1
jax: 0.10.0
libtpu: 0.0.40
codegen_flags: <defaults>
</compile_context>

<pallas_src>
import numpy as np
import jax
import jax.numpy as jnp
from jax import lax
from jax.experimental import pallas as pl
from jax.experimental.pallas import tpu as pltpu

LUMINANCE_QUANTIZATION_TABLE = np.array(
    ((16, 11, 10, 16, 24, 40, 51, 61),
     (12, 12, 14, 19, 26, 58, 60, 55),
     (14, 13, 16, 24, 40, 57, 69, 56),
     (14, 17, 22, 29, 51, 87, 80, 62),
     (18, 22, 37, 56, 68, 109, 103, 77),
     (24, 36, 55, 64, 81, 104, 113, 92),
     (49, 64, 78, 87, 103, 121, 120, 101),
     (72, 92, 95, 98, 112, 100, 103, 99)), dtype=np.float64)

BLOCK_SIZE = 8


def _dct_matrix(n=BLOCK_SIZE):
    """Orthonormal DCT-II matrix D[k, i], matching the module's grid_factors/cos form."""
    k = np.arange(n)[:, None].astype(np.float64)
    i = np.arange(n)[None, :].astype(np.float64)
    g = np.where(k == 0, 2.0 / np.sqrt(4.0 * n), 2.0 / np.sqrt(2.0 * n))
    return g * np.cos(np.pi * k * (2.0 * i + 1.0) / (2.0 * n))


def _q_table(qf):
    """Reproduces Set_Q_Table(QF) for the luminance table."""
    qf = float(qf)
    factor = (5000.0 / qf) if qf < 50.0 else (200.0 - 2.0 * qf)
    synthetic = LUMINANCE_QUANTIZATION_TABLE / 100.0
    return np.clip(np.round(factor * synthetic), 1.0, 255.0)


def _largest_divisor_leq(n, cap):
    cap = max(1, min(n, cap))
    for d in range(cap, 0, -1):
        if n % d == 0:
            return d
    return 1


def _max_tile_bytes():
    # 4 MiB/buffer is safe for v7x's 64 MiB VMEM (in+out double-buffered ~16 MiB);
    # allow 8 MiB/buffer on 128 MiB chips (v5e/v6e) to amortize per-step overhead.
    try:
        vmem = pltpu.get_tpu_info().vmem_capacity_bytes
        if vmem is not None and vmem >= 96 * 2**20:
            return 8 * 2**20
    except Exception:
        pass
    return 4 * 2**20


def _make_kernel(G, gr, quantize, mxu_dtype):
    cast = jnp.dtype(mxu_dtype) != jnp.dtype(jnp.float32)

    def kernel(x_ref, dcol_ref, drow_ref, qinv_ref, bias_ref, o_ref):
        # Resident constants (constant index_map keeps them in VMEM across steps).
        dcol = dcol_ref[...]      # (gr, gr)  kron(I, D)
        drow = drow_ref[...]      # (cw, cw)  kron(I, D^T)
        qinv = qinv_ref[...]      # (gr, cw)  tiled 1/Q
        bias = bias_ref[...]      # (gr, cw)  folded -128 level shift (DC only)

        def compute(r0):
            xs = x_ref[pl.ds(r0, gr), :]                      # (gr, cw) raw pixels
            if cast:
                xs = xs.astype(mxu_dtype)
            # Within-block row DCT (sublane side).
            yc = jnp.dot(dcol, xs, preferred_element_type=jnp.float32)
            if cast:
                yc = yc.astype(mxu_dtype)
            # Within-block column DCT (lane side).
            z = jnp.dot(yc, drow, preferred_element_type=jnp.float32)
            # Quantization scale + DC level-shift bias, in f32 on the VPU.
            z = z * qinv - bias
            if quantize:
                z = jnp.round(z)
            o_ref[pl.ds(r0, gr), :] = z

        if G <= 8:
            for g in range(G):
                compute(g * gr)
        else:
            def body(g, carry):
                compute(pl.multiple_of(g * gr, gr))
                return carry
            lax.fori_loop(0, G, body, 0)

    return kernel


def jpeg_compress(x, qf=50.0, quantize=True, mxu_dtype=jnp.float32):
    """Forward pass of JPEG(compress=True, downsample_or_quantize=quantize, chroma_mode=False).

    x: (B, 1, H, W) float32, H % 8 == 0, W % 8 == 0.
    Returns (B, 64, H/8, W/8) float32.
    mxu_dtype=jnp.bfloat16 is recommended on v5e (and helps v7x); default f32 is exact.
    """
    B, C, H, W = x.shape
    bs = BLOCK_SIZE
    assert C == 1, "luminance path expects a single channel"
    assert H % bs == 0 and W % bs == 0
    Hb, Wb = H // bs, W // bs
    rows = B * H                 # total pixel rows (8-row groups never straddle a batch)
    brows = B * Hb               # total 8-row block groups

    # ---- tiling (all extents are exact divisors -> no padding, no ragged blocks) ----
    if W % 256 == 0:
        cw = 256                                   # full-width MXU weight for the row pass
    elif W % 128 == 0:
        cw = 128
    else:
        cw = bs * _largest_divisor_leq(W // bs, 16)  # <=128, multiple of 8
    grp_br = _largest_divisor_leq(brows, 16)       # block-rows per column-DCT group
    gr = bs * grp_br                               # pixel rows per group (<= 128)
    num_groups = brows // grp_br
    num_chunks = W // cw

    max_tile_bytes = _max_tile_bytes()
    max_g = max(1, max_tile_bytes // (gr * cw * 4))
    G = _largest_divisor_leq(num_groups, max_g)
    # Keep >= 4 total grid steps when there is enough work (v7x: two TensorCores).
    while G > 1 and (num_groups // G) * num_chunks < 4:
        G = _largest_divisor_leq(num_groups, G - 1)
    tile_rows = G * gr
    grid = (num_groups // G, num_chunks)

    # ---- host-side constants (deterministic, computed in-script) -------------------
    D = _dct_matrix(bs)
    Q = _q_table(qf)                                           # (8, 8)
    dcol = jnp.asarray(np.kron(np.eye(grp_br), D), dtype=mxu_dtype)        # (gr, gr)
    drow = jnp.asarray(np.kron(np.eye(cw // bs), D.T), dtype=mxu_dtype)    # (cw, cw)
    qinv8 = 1.0 / Q
    bias8 = np.zeros((bs, bs), dtype=np.float64)
    bias8[0, 0] = 128.0 * bs / Q[0, 0]             # DCT2D(128*ones)[0,0] / Q[0,0] = 1024/Q00
    qinv = jnp.asarray(np.tile(qinv8, (gr // bs, cw // bs)), dtype=jnp.float32)
    bias = jnp.asarray(np.tile(bias8, (gr // bs, cw // bs)), dtype=jnp.float32)

    # Free (bitcast) reshape: (B,1,H,W) -> (B*H, W); the kernel reads raw pixels.
    x2 = x.reshape(rows, W)
    if x2.dtype != jnp.float32:
        x2 = x2.astype(jnp.float32)

    vmem_limit = int(4 * tile_rows * cw * 4 + 12 * 2**20)   # dbl-buffered in+out + headroom

    out = pl.pallas_call(
        _make_kernel(G, gr, quantize, mxu_dtype),
        out_shape=jax.ShapeDtypeStruct((rows, W), jnp.float32),
        grid_spec=pltpu.PrefetchScalarGridSpec(
            num_scalar_prefetch=0,
            grid=grid,
            in_specs=[
                pl.BlockSpec((tile_rows, cw), lambda i, j: (i, j)),
                # resident constants (constant index_map keeps them in VMEM)
                pl.BlockSpec((gr, gr), lambda i, j: (0, 0)),
                pl.BlockSpec((cw, cw), lambda i, j: (0, 0)),
                pl.BlockSpec((gr, cw), lambda i, j: (0, 0)),
                pl.BlockSpec((gr, cw), lambda i, j: (0, 0)),
            ],
            out_specs=pl.BlockSpec((tile_rows, cw), lambda i, j: (i, j)),
        ),
        compiler_params=pltpu.CompilerParams(
            dimension_semantics=("parallel", "parallel"),
            vmem_limit_bytes=vmem_limit,
        ),
    )(x2, dcol, drow, qinv, bias)

    # Frequency (k*8+l) -> channel dim; the only remaining XLA layout pass.
    out = out.reshape(B, Hb, bs, Wb, bs).transpose(0, 2, 4, 1, 3)
    return out.reshape(B, bs * bs, Hb, Wb)


# ----------------------------- self-test ---------------------------------------------

def _reference(x_np, qf=50.0, quantize=True):
    B, _, H, W = x_np.shape
    Hb, Wb = H // 8, W // 8
    xb = x_np[:, 0].astype(np.float64).reshape(B, Hb, 8, Wb, 8).transpose(0, 1, 3, 2, 4) - 128.0
    D = _dct_matrix(8)
    F = np.einsum('ki,lj,bhwij->bhwkl', D, D, xb) / _q_table(qf)
    if quantize:
        F = np.round(F)
    return F.reshape(B, Hb, Wb, 64).transpose(0, 3, 1, 2)


if __name__ == "__main__":
    key = jax.random.PRNGKey(0)

    def check(shape, qf=50.0):
        k = jax.random.fold_in(key, shape[0] * 100000 + shape[2] * 1000 + shape[3])
        x = jax.random.uniform(k, shape, dtype=jnp.float32, minval=0.0, maxval=255.0)
        fn = jax.jit(lambda t: jpeg_compress(t, qf=qf, quantize=True))
        out = jax.block_until_ready(fn(x))
        ref = _reference(np.asarray(x, dtype=np.float64), qf=qf, quantize=True)
        out_np = np.asarray(out, dtype=np.float64)
        assert out_np.shape == ref.shape, (out_np.shape, ref.shape)
        diff = np.abs(out_np - ref)
        # +-1 tolerance for values that land exactly on a rounding boundary.
        assert np.max(diff) <= 1.0 + 1e-6, f"max diff {np.max(diff)} for {shape}"
        assert np.mean(diff) < 1e-2, f"mean diff {np.mean(diff)} for {shape}"

    check((2, 1, 16, 16))       # tiny: single grid step, cw == W
    check((8, 1, 128, 128))     # multi row-tile grid + multi-group in-kernel loop
    check((2, 1, 128, 384))     # multi lane-chunk grid (cw = 128, 3 chunks)
    print("KERNEL_OK")
</pallas_src>

<mosaic_0001>
module attributes {stable_mosaic.version = 11 : i64} {
  func.func @kernel(%arg0: i32, %arg1: i32, %arg2: memref<32x16xf32, #tpu.memory_space<vmem>>, %arg3: memref<32x32xf32, #tpu.memory_space<vmem>>, %arg4: memref<16x16xf32, #tpu.memory_space<vmem>>, %arg5: memref<32x16xf32, #tpu.memory_space<vmem>>, %arg6: memref<32x16xf32, #tpu.memory_space<vmem>>, %arg7: memref<32x16xf32, #tpu.memory_space<vmem>>) attributes {dimension_semantics = [#tpu.dimension_semantics<parallel>, #tpu.dimension_semantics<parallel>], iteration_bounds = array<i64: 1, 1>, scalar_prefetch = 0 : i64, scratch_operands = 0 : i64, tpu.core_type = #tpu.core_type<tc>, window_params = [{transform_indices = @transform_0, window_bounds = array<i64: 32, 16>}, {pipeline_mode = #tpu.pipeline_mode<synchronous>, transform_indices = @transform_1, window_bounds = array<i64: 32, 32>}, {pipeline_mode = #tpu.pipeline_mode<synchronous>, transform_indices = @transform_2, window_bounds = array<i64: 16, 16>}, {pipeline_mode = #tpu.pipeline_mode<synchronous>, transform_indices = @transform_3, window_bounds = array<i64: 32, 16>}, {pipeline_mode = #tpu.pipeline_mode<synchronous>, transform_indices = @transform_4, window_bounds = array<i64: 32, 16>}, {transform_indices = @transform_5, window_bounds = array<i64: 32, 16>}]} {
    %c0 = arith.constant 0 : index
    %c0_0 = arith.constant 0 : index
    %0 = vector.load %arg3[%c0, %c0_0] : memref<32x32xf32, #tpu.memory_space<vmem>>, vector<32x32xf32>
    %c0_1 = arith.constant 0 : index
    %c0_2 = arith.constant 0 : index
    %1 = vector.load %arg4[%c0_1, %c0_2] : memref<16x16xf32, #tpu.memory_space<vmem>>, vector<16x16xf32>
    %c0_3 = arith.constant 0 : index
    %c0_4 = arith.constant 0 : index
    %2 = vector.load %arg5[%c0_3, %c0_4] : memref<32x16xf32, #tpu.memory_space<vmem>>, vector<32x16xf32>
    %c0_5 = arith.constant 0 : index
    %c0_6 = arith.constant 0 : index
    %3 = vector.load %arg6[%c0_5, %c0_6] : memref<32x16xf32, #tpu.memory_space<vmem>>, vector<32x16xf32>
    %c0_7 = arith.constant 0 : index
    %c0_8 = arith.constant 0 : index
    %4 = vector.load %arg2[%c0_7, %c0_8] : memref<32x16xf32, #tpu.memory_space<vmem>>, vector<32x16xf32>
    %cst = arith.constant dense<0.000000e+00> : vector<32x16xf32>
    %5 = tpu.matmul %0, %4, %cst {dimension_numbers = #tpu.dot_dimension_numbers<[1], [0], [0], [1], [0, 0, 1, 1], [], []>} : vector<32x32xf32>, vector<32x16xf32>, vector<32x16xf32> -> vector<32x16xf32>
    %cst_9 = arith.constant dense<0.000000e+00> : vector<32x16xf32>
    %6 = tpu.matmul %5, %1, %cst_9 {dimension_numbers = #tpu.dot_dimension_numbers<[1], [0], [0], [1], [0, 0, 1, 1], [], []>} : vector<32x16xf32>, vector<16x16xf32>, vector<32x16xf32> -> vector<32x16xf32>
    %7 = arith.mulf %6, %2 : vector<32x16xf32>
    %8 = arith.subf %7, %3 : vector<32x16xf32>
    %9 = math.roundeven %8 : vector<32x16xf32>
    %c0_10 = arith.constant 0 : index
    %c0_11 = arith.constant 0 : index
    %10 = vector.load %arg7[%c0_10, %c0_11] : memref<32x16xf32, #tpu.memory_space<vmem>>, vector<32x16xf32>
    tpu.vector_store %arg7[%c0_10, %c0_11], %9 {strides = array<i32>} : memref<32x16xf32, #tpu.memory_space<vmem>>, vector<32x16xf32>,
    return
  }
  func.func @transform_0(%arg0: i32, %arg1: i32) -> (i32, i32) {
    %c0_i32 = arith.constant 0 : i32
    return %arg0, %arg1 : i32, i32
  }
  func.func @transform_1(%arg0: i32, %arg1: i32) -> (i32, i32) {
    %c0_i32 = arith.constant 0 : i32
    %c0_i32_0 = arith.constant 0 : i32
    %c0_i32_1 = arith.constant 0 : i32
    return %c0_i32, %c0_i32_0 : i32, i32
  }
  func.func @transform_2(%arg0: i32, %arg1: i32) -> (i32, i32) {
    %c0_i32 = arith.constant 0 : i32
    %c0_i32_0 = arith.constant 0 : i32
    %c0_i32_1 = arith.constant 0 : i32
    return %c0_i32, %c0_i32_0 : i32, i32
  }
  func.func @transform_3(%arg0: i32, %arg1: i32) -> (i32, i32) {
    %c0_i32 = arith.constant 0 : i32
    %c0_i32_0 = arith.constant 0 : i32
    %c0_i32_1 = arith.constant 0 : i32
    return %c0_i32, %c0_i32_0 : i32, i32
  }
  func.func @transform_4(%arg0: i32, %arg1: i32) -> (i32, i32) {
    %c0_i32 = arith.constant 0 : i32
    %c0_i32_0 = arith.constant 0 : i32
    %c0_i32_1 = arith.constant 0 : i32
    return %c0_i32, %c0_i32_0 : i32, i32
  }
  func.func @transform_5(%arg0: i32, %arg1: i32) -> (i32, i32) {
    %c0_i32 = arith.constant 0 : i32
    return %arg0, %arg1 : i32, i32
  }
}

</mosaic_0001>

<llo_original>
// kernel: _lambda_.1
$region0: #{_lambda_.1}
  #allocation0 [shape = 'u32[]', space=smem, size = 0x4, offset = 0x4, fixed_abs, tag = 'smem constant byte address 0x4 - core index']
  #allocation1 [shape = 'u32[144,128]{1,0:T(1,128)}', space=vmem, size = 0x12000, scoped, tag = 'internal scratch']
  %s0 = inlined_call_operand.hbm [shape: f32[32,16], index: 0, kind: input, shape index: {}]
  %s1 = inlined_call_operand.hbm [shape: f32[32,32], index: 1, kind: input, shape index: {}]
  %s2 = inlined_call_operand.hbm [shape: f32[16,16], index: 2, kind: input, shape index: {}]
  %s3 = inlined_call_operand.hbm [shape: f32[32,16], index: 3, kind: input, shape index: {}]
  %s4 = inlined_call_operand.hbm [shape: f32[32,16], index: 4, kind: input, shape index: {}]
  %s5 = inlined_call_operand.vmem [shape: f32[32,16], index: 5, kind: output, shape index: {}]
  %s6 = sld [smem:[#allocation0]]
  $region50: #{_lambda_.1} parent=0
    _
  %s8 = ssub.s32 1, %s6
  %s9 = scalar_select 0, %s8, %s6
  $region1: #{_lambda_.1} parent=0
    #allocation2 [shape = 'u8[16384]{0}', space=vmem, size = 0x4000, scoped, tag = 'input window, operand 0, single buffered']
    #allocation3 [shape = 's32[1]{0}', space=sflag, size = 0x4, scoped, tag = 'scoped memory for _lambda_.1']
    #allocation4 [shape = 'u8[16384]{0}', space=vmem, size = 0x4000, scoped, tag = 'input window, operand 1, single buffered']
    #allocation5 [shape = 's32[1]{0}', space=sflag, size = 0x4, scoped, tag = 'scoped memory for _lambda_.1']
    #allocation6 [shape = 'u8[8192]{0}', space=vmem, size = 0x2000, scoped, tag = 'input window, operand 2, single buffered']
    #allocation7 [shape = 'u8[16384]{0}', space=vmem, size = 0x4000, scoped, tag = 'input window, operand 3, single buffered']
    #allocation8 [shape = 's32[1]{0}', space=sflag, size = 0x4, scoped, tag = 'scoped memory for _lambda_.1']
    #allocation9 [shape = 'u8[16384]{0}', space=vmem, size = 0x4000, scoped, tag = 'input window, operand 4, single buffered']
    %10 = vsyncpa [#allocation3], 0
    %11 = vsyncpa [#allocation5], 0
    %12 = vsyncpa [#allocation8], 0
    // Predicated region
    $region2: #{_lambda_.1} parent=1 // pred_check
      _
    $region3: #{_lambda_.1} parent=1 // pred_check_branch
      %14 = sbr.rel (0) target = $region5
    $region4: #{_lambda_.1} parent=1 // pred_region
      %s16 = ssub.s32 512, 512
      %17 = vsyncadd [#allocation3], %s16
      %s18 = sshll.u32 [#allocation2], 4
      %s19 = int_to_ptr.vmem [resolvable:$true] %s18
      %24 = dma.hbm_to_vmem [thread:$0]  %s0, 512, %s19, [#allocation3], 128, 128, 8
    $region5: #{_lambda_.1} parent=1 // pred_fallthru
      _
    // Predicated region
    $region6: #{_lambda_.1} parent=1 // pred_check
      _
    $region7: #{_lambda_.1} parent=1 // pred_check_branch
      %26 = sbr.rel (0) target = $region9
    $region8: #{_lambda_.1} parent=1 // pred_region
      %s28 = ssub.s32 512, 512
      %29 = vsyncadd [#allocation5], %s28
      %s30 = sshll.u32 [#allocation4], 4
      %s31 = int_to_ptr.vmem [resolvable:$true] %s30
      %36 = dma.hbm_to_vmem [thread:$0]  %s1, 512, %s31, [#allocation5], 128, 128, 8
    $region9: #{_lambda_.1} parent=1 // pred_fallthru
      _
    // Predicated region
    $region10: #{_lambda_.1} parent=1 // pred_check
      _
    $region11: #{_lambda_.1} parent=1 // pred_check_branch
      %38 = sbr.rel (0) target = $region13
    $region12: #{_lambda_.1} parent=1 // pred_region
      %s40 = ssub.s32 256, 256
      %41 = vsyncadd [#allocation5], %s40
      %s42 = sshll.u32 [#allocation6], 4
      %s43 = int_to_ptr.vmem [resolvable:$true] %s42
      %48 = dma.hbm_to_vmem [thread:$0]  %s2, 256, %s43, [#allocation5], 128, 128, 8
    $region13: #{_lambda_.1} parent=1 // pred_fallthru
      _
    // Predicated region
    $region14: #{_lambda_.1} parent=1 // pred_check
      _
    $region15: #{_lambda_.1} parent=1 // pred_check_branch
      %50 = sbr.rel (0) target = $region17
    $region16: #{_lambda_.1} parent=1 // pred_region
      %s52 = ssub.s32 512, 512
      %53 = vsyncadd [#allocation8], %s52
      %s54 = sshll.u32 [#allocation7], 4
      %s55 = int_to_ptr.vmem [resolvable:$true] %s54
      %60 = dma.hbm_to_vmem [thread:$0]  %s3, 512, %s55, [#allocation8], 128, 128, 8
    $region17: #{_lambda_.1} parent=1 // pred_fallthru
      _
    // Predicated region
    $region18: #{_lambda_.1} parent=1 // pred_check
      _
    $region19: #{_lambda_.1} parent=1 // pred_check_branch
      %62 = sbr.rel (0) target = $region21
    $region20: #{_lambda_.1} parent=1 // pred_region
      %s64 = ssub.s32 512, 512
      %65 = vsyncadd [#allocation8], %s64
      %s66 = sshll.u32 [#allocation9], 4
      %s67 = int_to_ptr.vmem [resolvable:$true] %s66
      %72 = dma.hbm_to_vmem [thread:$0]  %s4, 512, %s67, [#allocation8], 128, 128, 8
    $region21: #{_lambda_.1} parent=1 // pred_fallthru
      _
    // Predicated region
    $region22: #{_lambda_.1} parent=1 // pred_check
      _
    $region23: #{_lambda_.1} parent=1 // pred_check_branch
      %74 = sbr.rel (0) target = $region25
    $region24: #{_lambda_.1} parent=1 // pred_region
      %75 = dma.done [#allocation3], 512
    $region25: #{_lambda_.1} parent=1 // pred_fallthru
      _
    // Predicated region
    $region26: #{_lambda_.1} parent=1 // pred_check
      _
    $region27: #{_lambda_.1} parent=1 // pred_check_branch
      %77 = sbr.rel (0) target = $region29
    $region28: #{_lambda_.1} parent=1 // pred_region
      %78 = dma.done [#allocation5], 512
    $region29: #{_lambda_.1} parent=1 // pred_fallthru
      _
    // Predicated region
    $region30: #{_lambda_.1} parent=1 // pred_check
      _
    $region31: #{_lambda_.1} parent=1 // pred_check_branch
      %80 = sbr.rel (0) target = $region33
    $region32: #{_lambda_.1} parent=1 // pred_region
      %81 = dma.done [#allocation5], 256
    $region33: #{_lambda_.1} parent=1 // pred_fallthru
      _
    // Predicated region
    $region34: #{_lambda_.1} parent=1 // pred_check
      _
    $region35: #{_lambda_.1} parent=1 // pred_check_branch
      %83 = sbr.rel (0) target = $region37
    $region36: #{_lambda_.1} parent=1 // pred_region
      %84 = dma.done [#allocation8], 512
    $region37: #{_lambda_.1} parent=1 // pred_fallthru
      _
    // Predicated region
    $region38: #{_lambda_.1} parent=1 // pred_check
      _
    $region39: #{_lambda_.1} parent=1 // pred_check_branch
      %86 = sbr.rel (0) target = $region41
    $region40: #{_lambda_.1} parent=1 // pred_region
      %87 = dma.done [#allocation8], 512
    $region41: #{_lambda_.1} parent=1 // pred_fallthru
      _
    %v88 = vld [vmem:[#allocation4] sm:$0xff]
    %v89 = vld [vmem:[#allocation4 + $0x8] sm:$0xff]
    %v90 = vld [vmem:[#allocation4 + $0x10] sm:$0xff]
    %v91 = vld [vmem:[#allocation4 + $0x18] sm:$0xff]
    %v92 = vld [vmem:[#allocation6] sm:$0xff]
    %v93 = vld [vmem:[#allocation6 + $0x8] sm:$0xff]
    %v94 = vld [vmem:[#allocation7] sm:$0xff]
    %v95 = vld [vmem:[#allocation7 + $0x8] sm:$0xff]
    %v96 = vld [vmem:[#allocation7 + $0x10] sm:$0xff]
    %v97 = vld [vmem:[#allocation7 + $0x18] sm:$0xff]
    %v98 = vld [vmem:[#allocation9] sm:$0xff]
    %v99 = vld [vmem:[#allocation9 + $0x8] sm:$0xff]
    %v100 = vld [vmem:[#allocation9 + $0x10] sm:$0xff]
    %v101 = vld [vmem:[#allocation9 + $0x18] sm:$0xff]
    %v102 = vld [vmem:[#allocation2] sm:$0xff]
    %v103 = vld [vmem:[#allocation2 + $0x8] sm:$0xff]
    %v104 = vld [vmem:[#allocation2 + $0x10] sm:$0xff]
    %v105 = vld [vmem:[#allocation2 + $0x18] sm:$0xff]
    %vm106 = vcmask 261120
    %v108 = vsel %vm106, %v88, 0
    %v111 = vsel %vm106, %v89, 0
    %v114 = vsel %vm106, %v90, 0
    %v117 = vsel %vm106, %v91, 0
    %119 = vmatprep.subr.mxu0 0.0
    %120 = vmatpush1.msra.mxu0 %v102
    %121 = vmatprep.subr.mxu0 0.0
    %122 = vmatpush1.msra.mxu0 %v103
    %123 = vmatprep.subr.mxu0 0.0
    %124 = vmatpush1.msra.mxu0 %v104
    %125 = vmatprep.subr.mxu0 0.0
    %126 = vmatpush1.msra.mxu0 %v105
    %127 = vmatprep.subr.mxu0 0.0
    %128 = vmatpush1.msra.mxu0 0.0
    %129 = vmatprep.subr.mxu0 0.0
    %130 = vmatpush1.msra.mxu0 0.0
    %131 = vmatprep.subr.mxu0 0.0
    %132 = vmatpush1.msra.mxu0 0.0
    %133 = vmatprep.subr.mxu0 0.0
    %134 = vmatpush1.msra.mxu0 0.0
    %135 = vmatprep.subr.mxu0 0.0
    %136 = vmatpush1.msra.mxu0 0.0
    %137 = vmatprep.subr.mxu0 0.0
    %138 = vmatpush1.msra.mxu0 0.0
    %139 = vmatprep.subr.mxu0 0.0
    %140 = vmatpush1.msra.mxu0 0.0
    %141 = vmatprep.subr.mxu0 0.0
    %142 = vmatpush1.msra.mxu0 0.0
    %143 = vmatprep.subr.mxu0 0.0
    %144 = vmatpush1.msra.mxu0 0.0
    %145 = vmatprep.subr.mxu0 0.0
    %146 = vmatpush1.msra.mxu0 0.0
    %147 = vmatprep.subr.mxu0 0.0
    %148 = vmatpush1.msra.mxu0 0.0
    %149 = vmatprep.subr.mxu0 0.0
    %150 = vmatpush1.msra.mxu0 0.0
    %151 = vmatprep.subr.mxu0 0.0
    %152 = vmatpush1.msra.mxu0 0.0
    %153 = vmatprep.subr.mxu0 0.0
    %154 = vmatpush1.msra.mxu0 0.0
    %155 = vmatprep.subr.mxu0 0.0
    %156 = vmatpush1.msra.mxu0 0.0
    %157 = vmatprep.subr.mxu0 0.0
    %158 = vmatpush1.msra.mxu0 0.0
    %159 = vmatprep.subr.mxu0 0.0
    %160 = vmatpush1.msra.mxu0 0.0
    %161 = vmatprep.subr.mxu0 0.0
    %162 = vmatpush1.msra.mxu0 0.0
    %163 = vmatprep.subr.mxu0 0.0
    %164 = vmatpush1.msra.mxu0 0.0
    %165 = vmatprep.subr.mxu0 0.0
    %166 = vmatpush1.msra.mxu0 0.0
    %167 = vmatprep.subr.mxu0 0.0
    %168 = vmatpush1.msra.mxu0 0.0
    %169 = vmatprep.subr.mxu0 0.0
    %170 = vmatpush1.msra.mxu0 0.0
    %171 = vmatprep.subr.mxu0 0.0
    %172 = vmatpush1.msra.mxu0 0.0
    %173 = vmatprep.subr.mxu0 0.0
    %174 = vmatpush1.msra.mxu0 0.0
    %175 = vmatprep.subr.mxu0 0.0
    %176 = vmatpush1.msra.mxu0 0.0
    %177 = vmatprep.subr.mxu0 0.0
    %178 = vmatpush1.msra.mxu0 0.0
    %179 = vmatprep.subr.mxu0 0.0
    %180 = vmatpush1.msra.mxu0 0.0
    %181 = vmatprep.subr.mxu0 0.0
    %182 = vmatpush1.msra.mxu0 0.0
    %183 = vmatprep.mubr.f32.mxu0 0.0
    %184 = vmatmul.mubr.f32.gmra.mrb[0].mxu0 %v108
    %v185 = vpop.f32.mrb[0].mxu0
    %v186 = vadd.f32 0.0, %v185
    %v187 = vpop.f32.mrb[0].mxu0
    %188 = vmatprep.mubr.f32.mxu0 0.0
    %189 = vmatmul.mubr.f32.gmra.mrb[0].mxu0 %v111
    %v190 = vpop.f32.mrb[0].mxu0
    %v191 = vadd.f32 0.0, %v190
    %v192 = vpop.f32.mrb[0].mxu0
    %193 = vmatprep.mubr.f32.mxu0 0.0
    %194 = vmatmul.mubr.f32.gmra.mrb[0].mxu0 %v114
    %v195 = vpop.f32.mrb[0].mxu0
    %v196 = vadd.f32 0.0, %v195
    %v197 = vpop.f32.mrb[0].mxu0
    %198 = vmatprep.mubr.f32.mxu0 0.0
    %199 = vmatmul.mubr.f32.gmra.mrb[0].mxu0 %v117
    %v200 = vpop.f32.mrb[0].mxu0
    %v201 = vadd.f32 0.0, %v200
    %v202 = vpop.f32.mrb[0].mxu0
    %203 = vdwg.mxu0
    %vm204 = vcmask 130048
    %v206 = vsel %vm204, %v186, 0
    %v209 = vsel %vm204, %v191, 0
    %v212 = vsel %vm204, %v196, 0
    %v215 = vsel %vm204, %v201, 0
    %217 = vmatprep.subr.mxu0 0.0
    %218 = vmatpush1.msra.mxu0 %v92
    %219 = vmatprep.subr.mxu0 0.0
    %220 = vmatpush1.msra.mxu0 %v93
    %221 = vmatprep.subr.mxu0 0.0
    %222 = vmatpush1.msra.mxu0 0.0
    %223 = vmatprep.subr.mxu0 0.0
    %224 = vmatpush1.msra.mxu0 0.0
    %225 = vmatprep.subr.mxu0 0.0
    %226 = vmatpush1.msra.mxu0 0.0
    %227 = vmatprep.subr.mxu0 0.0
    %228 = vmatpush1.msra.mxu0 0.0
    %229 = vmatprep.subr.mxu0 0.0
    %230 = vmatpush1.msra.mxu0 0.0
    %231 = vmatprep.subr.mxu0 0.0
    %232 = vmatpush1.msra.mxu0 0.0
    %233 = vmatprep.subr.mxu0 0.0
    %234 = vmatpush1.msra.mxu0 0.0
    %235 = vmatprep.subr.mxu0 0.0
    %236 = vmatpush1.msra.mxu0 0.0
    %237 = vmatprep.subr.mxu0 0.0
    %238 = vmatpush1.msra.mxu0 0.0
    %239 = vmatprep.subr.mxu0 0.0
    %240 = vmatpush1.msra.mxu0 0.0
    %241 = vmatprep.subr.mxu0 0.0
    %242 = vmatpush1.msra.mxu0 0.0
    %243 = vmatprep.subr.mxu0 0.0
    %244 = vmatpush1.msra.mxu0 0.0
    %245 = vmatprep.subr.mxu0 0.0
    %246 = vmatpush1.msra.mxu0 0.0
    %247 = vmatprep.subr.mxu0 0.0
    %248 = vmatpush1.msra.mxu0 0.0
    %249 = vmatprep.subr.mxu0 0.0
    %250 = vmatpush1.msra.mxu0 0.0
    %251 = vmatprep.subr.mxu0 0.0
    %252 = vmatpush1.msra.mxu0 0.0
    %253 = vmatprep.subr.mxu0 0.0
    %254 = vmatpush1.msra.mxu0 0.0
    %255 = vmatprep.subr.mxu0 0.0
    %256 = vmatpush1.msra.mxu0 0.0
    %257 = vmatprep.subr.mxu0 0.0
    %258 = vmatpush1.msra.mxu0 0.0
    %259 = vmatprep.subr.mxu0 0.0
    %260 = vmatpush1.msra.mxu0 0.0
    %261 = vmatprep.subr.mxu0 0.0
    %262 = vmatpush1.msra.mxu0 0.0
    %263 = vmatprep.subr.mxu0 0.0
    %264 = vmatpush1.msra.mxu0 0.0
    %265 = vmatprep.subr.mxu0 0.0
    %266 = vmatpush1.msra.mxu0 0.0
    %267 = vmatprep.subr.mxu0 0.0
    %268 = vmatpush1.msra.mxu0 0.0
    %269 = vmatprep.subr.mxu0 0.0
    %270 = vmatpush1.msra.mxu0 0.0
    %271 = vmatprep.subr.mxu0 0.0
    %272 = vmatpush1.msra.mxu0 0.0
    %273 = vmatprep.subr.mxu0 0.0
    %274 = vmatpush1.msra.mxu0 0.0
    %275 = vmatprep.subr.mxu0 0.0
    %276 = vmatpush1.msra.mxu0 0.0
    %277 = vmatprep.subr.mxu0 0.0
    %278 = vmatpush1.msra.mxu0 0.0
    %279 = vmatprep.subr.mxu0 0.0
    %280 = vmatpush1.msra.mxu0 0.0
    %281 = vmatprep.mubr.f32.mxu0 0.0
    %282 = vmatmul.mubr.f32.gmra.mrb[0].mxu0 %v206
    %v283 = vpop.f32.mrb[0].mxu0
    %v284 = vadd.f32 0.0, %v283
    %v285 = vpop.f32.mrb[0].mxu0
    %286 = vmatprep.mubr.f32.mxu0 0.0
    %287 = vmatmul.mubr.f32.gmra.mrb[0].mxu0 %v209
    %v288 = vpop.f32.mrb[0].mxu0
    %v289 = vadd.f32 0.0, %v288
    %v290 = vpop.f32.mrb[0].mxu0
    %291 = vmatprep.mubr.f32.mxu0 0.0
    %292 = vmatmul.mubr.f32.gmra.mrb[0].mxu0 %v212
    %v293 = vpop.f32.mrb[0].mxu0
    %v294 = vadd.f32 0.0, %v293
    %v295 = vpop.f32.mrb[0].mxu0
    %296 = vmatprep.mubr.f32.mxu0 0.0
    %297 = vmatmul.mubr.f32.gmra.mrb[0].mxu0 %v215
    %v298 = vpop.f32.mrb[0].mxu0
    %v299 = vadd.f32 0.0, %v298
    %v300 = vpop.f32.mrb[0].mxu0
    %301 = vdwg.mxu0
    %v302 = vmul.f32 %v284, %v94
    %v303 = vmul.f32 %v289, %v95
    %v304 = vmul.f32 %v294, %v96
    %v305 = vmul.f32 %v299, %v97
    %v306 = vsub.f32 %v302, %v98
    %v307 = vsub.f32 %v303, %v99
    %v308 = vsub.f32 %v304, %v100
    %v309 = vsub.f32 %v305, %v101
    %v310 = vround.ne.pseudo %v306
    %v311 = vround.ne.pseudo %v307
    %v312 = vround.ne.pseudo %v308
    %v313 = vround.ne.pseudo %v309
    %314 = vst.msk [vmem:[%s5] sm:$0xff] %vm204, %v310
    %315 = vst.msk [vmem:[%s5 + $0x8] sm:$0xff] %vm204, %v311
    %316 = vst.msk [vmem:[%s5 + $0x10] sm:$0xff] %vm204, %v312
    %317 = vst.msk [vmem:[%s5 + $0x18] sm:$0xff] %vm204, %v313
    // Predicated region
    $region42: #{_lambda_.1} parent=1 // pred_check
      _
    $region43: #{_lambda_.1} parent=1 // pred_check_branch
      %319 = sbr.rel (0) target = $region45
    $region44: #{_lambda_.1} parent=1 // pred_region
      _
    $region45: #{_lambda_.1} parent=1 // pred_fallthru
      _
    // Predicated region
    $region46: #{_lambda_.1} parent=1 // pred_check
      _
    $region47: #{_lambda_.1} parent=1 // pred_check_branch
      %321 = sbr.rel (0) target = $region49
    $region48: #{_lambda_.1} parent=1 // pred_region
      _
    $region49: #{_lambda_.1} parent=1 // pred_fallthru
      _
    %322 = vsyncpa [#allocation3], 1
    %323 = vsyncpa [#allocation5], 1
    %324 = vsyncpa [#allocation8], 1

</llo_original>
